<compile_context>
chip_gen: v7x
topology: tpu7x:2x2x1
jax: 0.10.0
libtpu: 0.0.40
codegen_flags: <defaults>
</compile_context>

<pallas_src>
import jax
import jax.numpy as jnp
from jax.experimental import pallas as pl
from jax.experimental.pallas import tpu as pltpu

LANE = 128           # batch tile must be a multiple of the lane width
MAX_BLOCK_B = 8192   # per review: 4-8K tile keeps h1/h2 temporaries small and
                     # fits v5e's 16 MiB default scoped VMEM with headroom


def mlp_kernel(x_ref, w1_ref, b1_ref, w2_ref, b2_ref, w3_ref, b3_ref, o_ref):
    # x_ref: (4, TB) f32, feature-major tile (batch on lanes).
    # w*_ref: (out, in) bf16;  b*_ref: (out, 1) f32 (broadcast over lanes).
    # Dots: bf16 operands, f32 accumulate.  Elementwise chain stays f32.
    x = x_ref[...].astype(jnp.bfloat16)
    # NOTE: layer 1 is K=4 on the MXU; if a bundle dump ever shows the
    # vector-extended slot saturating on v6e/v7x, this layer can be moved to
    # the VPU with stride-0 sublane-broadcast multiply-adds.
    h1 = jnp.dot(w1_ref[...], x, preferred_element_type=jnp.float32) + b1_ref[...]
    h1 = jnp.maximum(h1, 0.0)
    h2 = jnp.dot(w2_ref[...], h1.astype(jnp.bfloat16),
                 preferred_element_type=jnp.float32) + b2_ref[...]
    h2 = jnp.maximum(h2, 0.0)
    h3 = jnp.dot(w3_ref[...], h2.astype(jnp.bfloat16),
                 preferred_element_type=jnp.float32) + b3_ref[...]
    o_ref[...] = h3.astype(o_ref.dtype)


def _round_up(n, m):
    return ((n + m - 1) // m) * m


def simple_haar_net_forward_fm(x_fm, kparams, max_block_b=MAX_BLOCK_B):
    """Feature-major forward: x_fm is (4, B) f32, returns (4, B) f32.

    This is the production path — no relayout copies around the kernel
    (padding/slicing only happens when B is not a multiple of the batch tile).
    """
    f_in, B = x_fm.shape
    w1, b1 = kparams["w1"], kparams["b1"]
    w2, b2 = kparams["w2"], kparams["b2"]
    w3, b3 = kparams["w3"], kparams["b3"]
    f_out = w3.shape[0]

    # Batch tile: lane-aligned, <= max_block_b, and >= 2 grid steps whenever
    # there is enough work so both v7x TensorCores get a share.
    bp = _round_up(max(B, LANE), LANE)
    tb = min(max_block_b, bp)
    if bp >= 2 * LANE and tb == bp:
        tb = max(LANE, _round_up(bp // 2, LANE))
    bp = _round_up(bp, tb)

    xin = x_fm
    if bp != B:
        xin = jnp.pad(x_fm, ((0, 0), (0, bp - B)))

    grid = (bp // tb,)
    # Constant index_maps keep the tiny weights/biases VMEM-resident.
    const_spec = lambda a: pl.BlockSpec(a.shape, lambda i: (0, 0))

    out = pl.pallas_call(
        mlp_kernel,
        out_shape=jax.ShapeDtypeStruct((f_out, bp), jnp.float32),
        grid=grid,
        in_specs=[
            pl.BlockSpec((f_in, tb), lambda i: (0, i)),   # activations: tiled over batch
            const_spec(w1), const_spec(b1),
            const_spec(w2), const_spec(b2),
            const_spec(w3), const_spec(b3),
        ],
        out_specs=pl.BlockSpec((f_out, tb), lambda i: (0, i)),
        compiler_params=pltpu.CompilerParams(
            dimension_semantics=("parallel",),            # shard batch across TCs (v7x)
        ),
    )(xin, w1, b1, w2, b2, w3, b3)

    if bp != B:
        out = out[:, :B]
    return out


def simple_haar_net_forward(x, kparams, max_block_b=MAX_BLOCK_B):
    """PyTorch-layout adapter: x is (B, 4), returns (B, 4).

    Prefer `simple_haar_net_forward_fm` with a feature-major model layout so
    the boundary transposes below never materialize as standalone HBM passes
    (otherwise jit-fuse this with its producer/consumer).
    """
    return simple_haar_net_forward_fm(x.T, kparams, max_block_b).T


def init_params(key):
    """Deterministic f32 init matching nn.Linear + xavier_uniform_ on weights.

    Weights are (out, in) — the torch.nn.Linear.weight layout — and biases
    (out, 1) so they broadcast over the lane (batch) axis.
    """
    def xavier_uniform(k, fan_in, fan_out):
        bound = (6.0 / (fan_in + fan_out)) ** 0.5
        return jax.random.uniform(k, (fan_out, fan_in), jnp.float32, -bound, bound)

    def linear_bias(k, fan_in, fan_out):
        bound = 1.0 / (fan_in ** 0.5)  # PyTorch default Linear bias init
        return jax.random.uniform(k, (fan_out, 1), jnp.float32, -bound, bound)

    ks = jax.random.split(key, 6)
    return {
        "w1": xavier_uniform(ks[0], 4, 16),  "b1": linear_bias(ks[1], 4, 16),
        "w2": xavier_uniform(ks[2], 16, 16), "b2": linear_bias(ks[3], 16, 16),
        "w3": xavier_uniform(ks[4], 16, 4),  "b3": linear_bias(ks[5], 16, 4),
    }


def prepare_kernel_params(params):
    """One-time cast of the weights to bf16 (MXU operand dtype); biases stay f32."""
    return {
        "w1": params["w1"].astype(jnp.bfloat16), "b1": params["b1"],
        "w2": params["w2"].astype(jnp.bfloat16), "b2": params["b2"],
        "w3": params["w3"].astype(jnp.bfloat16), "b3": params["b3"],
    }


def reference_forward(x, p):
    """Pure-JAX f32 reference matching the PyTorch module semantics."""
    h1 = jnp.maximum(x @ p["w1"].T + p["b1"].T, 0.0)
    h2 = jnp.maximum(h1 @ p["w2"].T + p["b2"].T, 0.0)
    return h2 @ p["w3"].T + p["b3"].T


if __name__ == "__main__":
    key = jax.random.PRNGKey(0)
    k_x, k_p = jax.random.split(key)

    B = 256                                           # small demo batch (2 grid steps)
    x = jax.random.normal(k_x, (B, 4), jnp.float32)   # PyTorch-layout input
    params = init_params(k_p)                         # f32, PyTorch-equivalent init
    kparams = prepare_kernel_params(params)           # bf16 weights, cast once

    # Production path: feature-major activations end-to-end (no relayout).
    x_fm = x.T
    out_fm = jax.block_until_ready(simple_haar_net_forward_fm(x_fm, kparams))

    # PyTorch-layout convenience path.
    out_rm = jax.block_until_ready(simple_haar_net_forward(x, kparams))

    ref = reference_forward(x, params)
    assert out_fm.shape == (4, B) and out_fm.dtype == jnp.float32
    assert out_rm.shape == (B, 4) and out_rm.dtype == jnp.float32
    # bf16 dot operands (deliberate) -> relaxed tolerance vs the f32 reference.
    assert jnp.allclose(out_fm.T, ref, atol=5e-2, rtol=5e-2)
    assert jnp.allclose(out_rm, ref, atol=5e-2, rtol=5e-2)
    print("KERNEL_OK")
</pallas_src>

<mosaic_0001>
module attributes {stable_mosaic.version = 11 : i64} {
  func.func @mlp_kernel(%arg0: i32, %arg1: memref<4x128xf32, #tpu.memory_space<vmem>>, %arg2: memref<16x4xbf16, #tpu.memory_space<vmem>>, %arg3: memref<16x1xf32, #tpu.memory_space<vmem>>, %arg4: memref<16x16xbf16, #tpu.memory_space<vmem>>, %arg5: memref<16x1xf32, #tpu.memory_space<vmem>>, %arg6: memref<4x16xbf16, #tpu.memory_space<vmem>>, %arg7: memref<4x1xf32, #tpu.memory_space<vmem>>, %arg8: memref<4x128xf32, #tpu.memory_space<vmem>>) attributes {dimension_semantics = [#tpu.dimension_semantics<parallel>], iteration_bounds = array<i64: 2>, scalar_prefetch = 0 : i64, scratch_operands = 0 : i64, tpu.core_type = #tpu.core_type<tc>, window_params = [{transform_indices = @transform_0, window_bounds = array<i64: 4, 128>}, {pipeline_mode = #tpu.pipeline_mode<synchronous>, transform_indices = @transform_1, window_bounds = array<i64: 16, 4>}, {pipeline_mode = #tpu.pipeline_mode<synchronous>, transform_indices = @transform_2, window_bounds = array<i64: 16, 1>}, {pipeline_mode = #tpu.pipeline_mode<synchronous>, transform_indices = @transform_3, window_bounds = array<i64: 16, 16>}, {pipeline_mode = #tpu.pipeline_mode<synchronous>, transform_indices = @transform_4, window_bounds = array<i64: 16, 1>}, {pipeline_mode = #tpu.pipeline_mode<synchronous>, transform_indices = @transform_5, window_bounds = array<i64: 4, 16>}, {pipeline_mode = #tpu.pipeline_mode<synchronous>, transform_indices = @transform_6, window_bounds = array<i64: 4, 1>}, {transform_indices = @transform_7, window_bounds = array<i64: 4, 128>}]} {
    %c0 = arith.constant 0 : index
    %c0_0 = arith.constant 0 : index
    %0 = vector.load %arg1[%c0, %c0_0] : memref<4x128xf32, #tpu.memory_space<vmem>>, vector<4x128xf32>
    %1 = arith.truncf %0 : vector<4x128xf32> to vector<4x128xbf16>
    %c0_1 = arith.constant 0 : index
    %c0_2 = arith.constant 0 : index
    %2 = vector.load %arg2[%c0_1, %c0_2] : memref<16x4xbf16, #tpu.memory_space<vmem>>, vector<16x4xbf16>
    %cst = arith.constant dense<0.000000e+00> : vector<16x128xf32>
    %3 = tpu.matmul %2, %1, %cst {dimension_numbers = #tpu.dot_dimension_numbers<[1], [0], [0], [1], [0, 0, 1, 1], [], []>} : vector<16x4xbf16>, vector<4x128xbf16>, vector<16x128xf32> -> vector<16x128xf32>
    %c0_3 = arith.constant 0 : index
    %c0_4 = arith.constant 0 : index
    %4 = vector.load %arg3[%c0_3, %c0_4] : memref<16x1xf32, #tpu.memory_space<vmem>>, vector<16x1xf32>
    %5 = vector.broadcast %4 : vector<16x1xf32> to vector<16x128xf32>
    %6 = arith.addf %3, %5 : vector<16x128xf32>
    %cst_5 = arith.constant 0.000000e+00 : f32
    %7 = vector.broadcast %cst_5 : f32 to vector<16x128xf32>
    %8 = arith.maximumf %6, %7 : vector<16x128xf32>
    %c0_6 = arith.constant 0 : index
    %c0_7 = arith.constant 0 : index
    %9 = vector.load %arg4[%c0_6, %c0_7] : memref<16x16xbf16, #tpu.memory_space<vmem>>, vector<16x16xbf16>
    %10 = arith.truncf %8 : vector<16x128xf32> to vector<16x128xbf16>
    %cst_8 = arith.constant dense<0.000000e+00> : vector<16x128xf32>
    %11 = tpu.matmul %9, %10, %cst_8 {dimension_numbers = #tpu.dot_dimension_numbers<[1], [0], [0], [1], [0, 0, 1, 1], [], []>} : vector<16x16xbf16>, vector<16x128xbf16>, vector<16x128xf32> -> vector<16x128xf32>
    %c0_9 = arith.constant 0 : index
    %c0_10 = arith.constant 0 : index
    %12 = vector.load %arg5[%c0_9, %c0_10] : memref<16x1xf32, #tpu.memory_space<vmem>>, vector<16x1xf32>
    %13 = vector.broadcast %12 : vector<16x1xf32> to vector<16x128xf32>
    %14 = arith.addf %11, %13 : vector<16x128xf32>
    %cst_11 = arith.constant 0.000000e+00 : f32
    %15 = vector.broadcast %cst_11 : f32 to vector<16x128xf32>
    %16 = arith.maximumf %14, %15 : vector<16x128xf32>
    %c0_12 = arith.constant 0 : index
    %c0_13 = arith.constant 0 : index
    %17 = vector.load %arg6[%c0_12, %c0_13] : memref<4x16xbf16, #tpu.memory_space<vmem>>, vector<4x16xbf16>
    %18 = arith.truncf %16 : vector<16x128xf32> to vector<16x128xbf16>
    %cst_14 = arith.constant dense<0.000000e+00> : vector<4x128xf32>
    %19 = tpu.matmul %17, %18, %cst_14 {dimension_numbers = #tpu.dot_dimension_numbers<[1], [0], [0], [1], [0, 0, 1, 1], [], []>} : vector<4x16xbf16>, vector<16x128xbf16>, vector<4x128xf32> -> vector<4x128xf32>
    %c0_15 = arith.constant 0 : index
    %c0_16 = arith.constant 0 : index
    %20 = vector.load %arg7[%c0_15, %c0_16] : memref<4x1xf32, #tpu.memory_space<vmem>>, vector<4x1xf32>
    %21 = vector.broadcast %20 : vector<4x1xf32> to vector<4x128xf32>
    %22 = arith.addf %19, %21 : vector<4x128xf32>
    %c0_17 = arith.constant 0 : index
    %c0_18 = arith.constant 0 : index
    %23 = vector.load %arg8[%c0_17, %c0_18] : memref<4x128xf32, #tpu.memory_space<vmem>>, vector<4x128xf32>
    tpu.vector_store %arg8[%c0_17, %c0_18], %22 {strides = array<i32>} : memref<4x128xf32, #tpu.memory_space<vmem>>, vector<4x128xf32>,
    return
  }
  func.func @transform_0(%arg0: i32) -> (i32, i32) {
    %c0_i32 = arith.constant 0 : i32
    %c0_i32_0 = arith.constant 0 : i32
    return %c0_i32, %arg0 : i32, i32
  }
  func.func @transform_1(%arg0: i32) -> (i32, i32) {
    %c0_i32 = arith.constant 0 : i32
    %c0_i32_0 = arith.constant 0 : i32
    %c0_i32_1 = arith.constant 0 : i32
    return %c0_i32, %c0_i32_0 : i32, i32
  }
  func.func @transform_2(%arg0: i32) -> (i32, i32) {
    %c0_i32 = arith.constant 0 : i32
    %c0_i32_0 = arith.constant 0 : i32
    %c0_i32_1 = arith.constant 0 : i32
    return %c0_i32, %c0_i32_0 : i32, i32
  }
  func.func @transform_3(%arg0: i32) -> (i32, i32) {
    %c0_i32 = arith.constant 0 : i32
    %c0_i32_0 = arith.constant 0 : i32
    %c0_i32_1 = arith.constant 0 : i32
    return %c0_i32, %c0_i32_0 : i32, i32
  }
  func.func @transform_4(%arg0: i32) -> (i32, i32) {
    %c0_i32 = arith.constant 0 : i32
    %c0_i32_0 = arith.constant 0 : i32
    %c0_i32_1 = arith.constant 0 : i32
    return %c0_i32, %c0_i32_0 : i32, i32
  }
  func.func @transform_5(%arg0: i32) -> (i32, i32) {
    %c0_i32 = arith.constant 0 : i32
    %c0_i32_0 = arith.constant 0 : i32
    %c0_i32_1 = arith.constant 0 : i32
    return %c0_i32, %c0_i32_0 : i32, i32
  }
  func.func @transform_6(%arg0: i32) -> (i32, i32) {
    %c0_i32 = arith.constant 0 : i32
    %c0_i32_0 = arith.constant 0 : i32
    %c0_i32_1 = arith.constant 0 : i32
    return %c0_i32, %c0_i32_0 : i32, i32
  }
  func.func @transform_7(%arg0: i32) -> (i32, i32) {
    %c0_i32 = arith.constant 0 : i32
    %c0_i32_0 = arith.constant 0 : i32
    return %c0_i32, %arg0 : i32, i32
  }
}

</mosaic_0001>

<llo_original>
// kernel: tpu_custom_call.1
$region0: #{tpu_custom_call.1}
  #allocation0 [shape = 'u32[]', space=smem, size = 0x4, offset = 0x4, fixed_abs, tag = 'smem constant byte address 0x4 - core index']
  #allocation1 [shape = 'u32[144,128]{1,0:T(1,128)}', space=vmem, size = 0x12000, scoped, tag = 'internal scratch']
  %s0 = inlined_call_operand.vmem [shape: f32[4,256], index: 0, kind: input, shape index: {}]
  %s1 = inlined_call_operand.vmem [shape: bf16[16,4], index: 1, kind: input, shape index: {}]
  %s2 = inlined_call_operand.vmem [shape: f32[16,1], index: 2, kind: input, shape index: {}]
  %s3 = inlined_call_operand.vmem [shape: bf16[16,16], index: 3, kind: input, shape index: {}]
  %s4 = inlined_call_operand.vmem [shape: f32[16,1], index: 4, kind: input, shape index: {}]
  %s5 = inlined_call_operand.vmem [shape: bf16[4,16], index: 5, kind: input, shape index: {}]
  %s6 = inlined_call_operand.vmem [shape: f32[4,1], index: 6, kind: input, shape index: {}]
  %s7 = inlined_call_operand.hbm [shape: f32[4,256], index: 7, kind: output, shape index: {}]
  %s8 = sld [smem:[#allocation0]]
  $region61: #{tpu_custom_call.1} parent=0
    _
  %s10 = ssub.s32 1, %s8
  %s11 = scalar_select 0, %s10, %s8
  $region1: #{tpu_custom_call.1} parent=0
    #allocation2 [shape = 'u8[4096]{0}', space=vmem, size = 0x1000, scoped, tag = 'output window, operand 0']
    #allocation3 [shape = 's32[2]{0}', space=sflag, size = 0x8, scoped, tag = 'scoped memory for tpu_custom_call.1']
    %12 = vsyncpa [#allocation3], 0
    %s13 = scalar_lea.sflag [#allocation3], 1
    %14 = vsyncpa %s13, 0
    loop: start=0, step=1, limit=4
    $region2: #{tpu_custom_call.1} parent=1 // loop_pre_header
      _
    $region3: #{tpu_custom_call.1} parent=1 // loop_header
      %s16 = sphi 0, %s20
      %p17 = scmp.ge.s32.totalorder %s16, 4
      %s26 = sphi 0, %s28
      %s29 = sphi 0, %s26
      %s30 = sphi 0, %s29
      %s46 = sphi 0, %s30
      %s50 = sphi 0, %s50
      %s52 = sphi 0, %s50
      %s53 = sphi 0, %s52
      %s67 = sphi 0, %s53
      %s71 = sphi 0, %s71
      %s73 = sphi 0, %s71
      %s74 = sphi 0, %s73
      %s88 = sphi 0, %s74
      %s92 = sphi 0, %s92
      %s94 = sphi 0, %s92
      %s95 = sphi 0, %s94
      %s109 = sphi 0, %s95
      %s113 = sphi 0, %s113
      %s115 = sphi 0, %s113
      %s116 = sphi 0, %s115
      %s130 = sphi 0, %s116
      %s134 = sphi 0, %s134
      %s136 = sphi 0, %s134
      %s137 = sphi 0, %s136
      %s151 = sphi 0, %s137
      %s155 = sphi 0, %s155
      %s157 = sphi 0, %s155
      %s158 = sphi 0, %s157
      %s172 = sphi 0, %s158
      %s178 = sphi 0, %s180
      %s181 = sphi 0, %s178
      %s182 = sphi 0, %s181
      %s198 = sphi 0, %s182
    $region4: #{tpu_custom_call.1} parent=1 // loop_header_branch
      %19 = sbr.rel (%p17) target = $region8
    $region5: #{tpu_custom_call.1} parent=1 // loop_body
      %s21 = ssub.s32 %s16, 1
      %s22 = ssub.s32 %s16, 2
      %s23 = sadd.s32 %s16, 1
      %s24 = ssub.s32 %s16, %s23
      %p25 = scmp.eq.s32.totalorder %s24, 0
      %s27 = sadd.s32 %s26, 1
      %s28 = scalar_select %p25, %s26, %s27
      %p31 = pneg %p25
      %p32 = scmp.eq.s32.totalorder %s16, 1
      %p33 = por %p31, %p32
      %p34 = scmp.ne.s32.totalorder %s26, %s29
      %p35 = scmp.eq.s32.totalorder %s16, 0
      %p36 = por %p34, %p35
      %p37 = scmp.ne.s32.totalorder %s26, %s29
      %p38 = scmp.eq.s32.totalorder %s21, 1
      %p39 = por %p37, %p38
      %p40 = scmp.ne.s32.totalorder %s29, %s30
      %p41 = scmp.eq.s32.totalorder %s21, 0
      %p42 = por %p40, %p41
      %p43 = scmp.ne.s32.totalorder %s29, %s30
      %p44 = scmp.eq.s32.totalorder %s22, 1
      %p45 = por %p43, %p44
      %p47 = scmp.ne.s32.totalorder %s30, %s46
      %p48 = scmp.eq.s32.totalorder %s22, 0
      %p49 = por %p47, %p48
      %s51 = sadd.s32 %s50, 1
      %p54 = scmp.eq.s32.totalorder %s16, 1
      %p55 = scmp.ne.s32.totalorder %s50, %s52
      %p56 = scmp.eq.s32.totalorder %s16, 0
      %p57 = por %p55, %p56
      %p58 = scmp.ne.s32.totalorder %s50, %s52
      %p59 = scmp.eq.s32.totalorder %s21, 1
      %p60 = por %p58, %p59
      %p61 = scmp.ne.s32.totalorder %s52, %s53
      %p62 = scmp.eq.s32.totalorder %s21, 0
      %p63 = por %p61, %p62
      %p64 = scmp.ne.s32.totalorder %s52, %s53
      %p65 = scmp.eq.s32.totalorder %s22, 1
      %p66 = por %p64, %p65
      %p68 = scmp.ne.s32.totalorder %s53, %s67
      %p69 = scmp.eq.s32.totalorder %s22, 0
      %p70 = por %p68, %p69
      %s72 = sadd.s32 %s71, 1
      %p75 = scmp.eq.s32.totalorder %s16, 1
      %p76 = scmp.ne.s32.totalorder %s71, %s73
      %p77 = scmp.eq.s32.totalorder %s16, 0
      %p78 = por %p76, %p77
      %p79 = scmp.ne.s32.totalorder %s71, %s73
      %p80 = scmp.eq.s32.totalorder %s21, 1
      %p81 = por %p79, %p80
      %p82 = scmp.ne.s32.totalorder %s73, %s74
      %p83 = scmp.eq.s32.totalorder %s21, 0
      %p84 = por %p82, %p83
      %p85 = scmp.ne.s32.totalorder %s73, %s74
      %p86 = scmp.eq.s32.totalorder %s22, 1
      %p87 = por %p85, %p86
      %p89 = scmp.ne.s32.totalorder %s74, %s88
      %p90 = scmp.eq.s32.totalorder %s22, 0
      %p91 = por %p89, %p90
      %s93 = sadd.s32 %s92, 1
      %p96 = scmp.eq.s32.totalorder %s16, 1
      %p97 = scmp.ne.s32.totalorder %s92, %s94
      %p98 = scmp.eq.s32.totalorder %s16, 0
      %p99 = por %p97, %p98
      %p100 = scmp.ne.s32.totalorder %s92, %s94
      %p101 = scmp.eq.s32.totalorder %s21, 1
      %p102 = por %p100, %p101
      %p103 = scmp.ne.s32.totalorder %s94, %s95
      %p104 = scmp.eq.s32.totalorder %s21, 0
      %p105 = por %p103, %p104
      %p106 = scmp.ne.s32.totalorder %s94, %s95
      %p107 = scmp.eq.s32.totalorder %s22, 1
      %p108 = por %p106, %p107
      %p110 = scmp.ne.s32.totalorder %s95, %s109
      %p111 = scmp.eq.s32.totalorder %s22, 0
      %p112 = por %p110, %p111
      %s114 = sadd.s32 %s113, 1
      %p117 = scmp.eq.s32.totalorder %s16, 1
      %p118 = scmp.ne.s32.totalorder %s113, %s115
      %p119 = scmp.eq.s32.totalorder %s16, 0
      %p120 = por %p118, %p119
      %p121 = scmp.ne.s32.totalorder %s113, %s115
      %p122 = scmp.eq.s32.totalorder %s21, 1
      %p123 = por %p121, %p122
      %p124 = scmp.ne.s32.totalorder %s115, %s116
      %p125 = scmp.eq.s32.totalorder %s21, 0
      %p126 = por %p124, %p125
      %p127 = scmp.ne.s32.totalorder %s115, %s116
      %p128 = scmp.eq.s32.totalorder %s22, 1
      %p129 = por %p127, %p128
      %p131 = scmp.ne.s32.totalorder %s116, %s130
      %p132 = scmp.eq.s32.totalorder %s22, 0
      %p133 = por %p131, %p132
      %s135 = sadd.s32 %s134, 1
      %p138 = scmp.eq.s32.totalorder %s16, 1
      %p139 = scmp.ne.s32.totalorder %s134, %s136
      %p140 = scmp.eq.s32.totalorder %s16, 0
      %p141 = por %p139, %p140
      %p142 = scmp.ne.s32.totalorder %s134, %s136
      %p143 = scmp.eq.s32.totalorder %s21, 1
      %p144 = por %p142, %p143
      %p145 = scmp.ne.s32.totalorder %s136, %s137
      %p146 = scmp.eq.s32.totalorder %s21, 0
      %p147 = por %p145, %p146
      %p148 = scmp.ne.s32.totalorder %s136, %s137
      %p149 = scmp.eq.s32.totalorder %s22, 1
      %p150 = por %p148, %p149
      %p152 = scmp.ne.s32.totalorder %s137, %s151
      %p153 = scmp.eq.s32.totalorder %s22, 0
      %p154 = por %p152, %p153
      %s156 = sadd.s32 %s155, 1
      %p159 = scmp.eq.s32.totalorder %s16, 1
      %p160 = scmp.ne.s32.totalorder %s155, %s157
      %p161 = scmp.eq.s32.totalorder %s16, 0
      %p162 = por %p160, %p161
      %p163 = scmp.ne.s32.totalorder %s155, %s157
      %p164 = scmp.eq.s32.totalorder %s21, 1
      %p165 = por %p163, %p164
      %p166 = scmp.ne.s32.totalorder %s157, %s158
      %p167 = scmp.eq.s32.totalorder %s21, 0
      %p168 = por %p166, %p167
      %p169 = scmp.ne.s32.totalorder %s157, %s158
      %p170 = scmp.eq.s32.totalorder %s22, 1
      %p171 = por %p169, %p170
      %p173 = scmp.ne.s32.totalorder %s158, %s172
      %p174 = scmp.eq.s32.totalorder %s22, 0
      %p175 = por %p173, %p174
      %s176 = ssub.s32 %s16, %s23
      %p177 = scmp.eq.s32.totalorder %s176, 0
      %s179 = sadd.s32 %s178, 1
      %s180 = scalar_select %p177, %s178, %s179
      %p183 = pneg %p177
      %p184 = scmp.eq.s32.totalorder %s16, 1
      %p185 = por %p183, %p184
      %p186 = scmp.ne.s32.totalorder %s178, %s181
      %p187 = scmp.eq.s32.totalorder %s16, 0
      %p188 = por %p186, %p187
      %p189 = scmp.ne.s32.totalorder %s178, %s181
      %p190 = scmp.eq.s32.totalorder %s21, 1
      %p191 = por %p189, %p190
      %p192 = scmp.ne.s32.totalorder %s181, %s182
      %p193 = scmp.eq.s32.totalorder %s21, 0
      %p194 = por %p192, %p193
      %p195 = scmp.ne.s32.totalorder %s181, %s182
      %p196 = scmp.eq.s32.totalorder %s22, 1
      %p197 = por %p195, %p196
      %p199 = scmp.ne.s32.totalorder %s182, %s198
      %p200 = scmp.eq.s32.totalorder %s22, 0
      %p201 = por %p199, %p200
      %p202 = scmp.le.s32.totalorder 1, %s16
      %p203 = scmp.lt.s32.totalorder %s16, 3
      %p204 = pnand %p202, %p203
      %p205 = pneg %p204
      // Predicated region
      $region9: #{tpu_custom_call.1} parent=5 // pred_check
        _
      $region10: #{tpu_custom_call.1} parent=5 // pred_check_branch
        %207 = sbr.rel (%p204) target = $region12
      $region11: #{tpu_custom_call.1} parent=5 // pred_region
        %s208 = ssub.s32 %s16, 1
        // Predicated region
        $region13: #{tpu_custom_call.1} parent=11 // pred_check
          %p209 = pneg %p63
        $region14: #{tpu_custom_call.1} parent=11 // pred_check_branch
          %211 = sbr.rel (%p209) target = $region16
        $region15: #{tpu_custom_call.1} parent=11 // pred_region
          _
        $region16: #{tpu_custom_call.1} parent=11 // pred_fallthru
          _
        // Predicated region
        $region17: #{tpu_custom_call.1} parent=11 // pred_check
          %p212 = pneg %p84
        $region18: #{tpu_custom_call.1} parent=11 // pred_check_branch
          %214 = sbr.rel (%p212) target = $region20
        $region19: #{tpu_custom_call.1} parent=11 // pred_region
          _
        $region20: #{tpu_custom_call.1} parent=11 // pred_fallthru
          _
        // Predicated region
        $region21: #{tpu_custom_call.1} parent=11 // pred_check
          %p215 = pneg %p105
        $region22: #{tpu_custom_call.1} parent=11 // pred_check_branch
          %217 = sbr.rel (%p215) target = $region24
        $region23: #{tpu_custom_call.1} parent=11 // pred_region
          _
        $region24: #{tpu_custom_call.1} parent=11 // pred_fallthru
          _
        // Predicated region
        $region25: #{tpu_custom_call.1} parent=11 // pred_check
          %p218 = pneg %p126
        $region26: #{tpu_custom_call.1} parent=11 // pred_check_branch
          %220 = sbr.rel (%p218) target = $region28
        $region27: #{tpu_custom_call.1} parent=11 // pred_region
          _
        $region28: #{tpu_custom_call.1} parent=11 // pred_fallthru
          _
        // Predicated region
        $region29: #{tpu_custom_call.1} parent=11 // pred_check
          %p221 = pneg %p147
        $region30: #{tpu_custom_call.1} parent=11 // pred_check_branch
          %223 = sbr.rel (%p221) target = $region32
        $region31: #{tpu_custom_call.1} parent=11 // pred_region
          _
        $region32: #{tpu_custom_call.1} parent=11 // pred_fallthru
          _
        // Predicated region
        $region33: #{tpu_custom_call.1} parent=11 // pred_check
          %p224 = pneg %p168
        $region34: #{tpu_custom_call.1} parent=11 // pred_check_branch
          %226 = sbr.rel (%p224) target = $region36
        $region35: #{tpu_custom_call.1} parent=11 // pred_region
          _
        $region36: #{tpu_custom_call.1} parent=11 // pred_fallthru
          _
      $region12: #{tpu_custom_call.1} parent=5 // pred_fallthru
        _
      %p227 = scmp.lt.s32.totalorder %s16, 2
      // Predicated region
      $region37: #{tpu_custom_call.1} parent=5 // pred_check
        %p228 = pneg %p227
      $region38: #{tpu_custom_call.1} parent=5 // pred_check_branch
        %230 = sbr.rel (%p228) target = $region40
      $region39: #{tpu_custom_call.1} parent=5 // pred_region
        // Predicated region
        $region41: #{tpu_custom_call.1} parent=39 // pred_check
          %p231 = pneg %p36
        $region42: #{tpu_custom_call.1} parent=39 // pred_check_branch
          %233 = sbr.rel (%p231) target = $region44
        $region43: #{tpu_custom_call.1} parent=39 // pred_region
          %p234 = scmp.lt.s32.totalorder %s16, 1
          %s235 = scalar_select %p234, %s16, 1
          %s236 = smul.addr %s235, 4
          %s237 = scalar_lea.vmem %s0, %s236
        $region44: #{tpu_custom_call.1} parent=39 // pred_fallthru
          _
      $region40: #{tpu_custom_call.1} parent=5 // pred_fallthru
        _
      %p238 = scmp.le.s32.totalorder 1, %s16
      %p239 = scmp.lt.s32.totalorder %s16, 3
      %p240 = pnand %p238, %p239
      %p241 = pneg %p240
      // Predicated region
      $region45: #{tpu_custom_call.1} parent=5 // pred_check
        _
      $region46: #{tpu_custom_call.1} parent=5 // pred_check_branch
        %243 = sbr.rel (%p240) target = $region48
      $region47: #{tpu_custom_call.1} parent=5 // pred_region
        %s244 = ssub.s32 %s16, 1
        %p245 = scmp.lt.s32.totalorder %s21, 1
        %s246 = scalar_select %p245, %s21, 1
        %s247 = smul.addr %s246, 4
        %s248 = scalar_lea.vmem %s0, %s247
        %p249 = pneg %p42
        %p250 = pneg %p39
        %p251 = pneg %p63
        %p252 = pneg %p60
        %p253 = pneg %p84
        %p254 = pneg %p81
        %p255 = pneg %p105
        %p256 = pneg %p102
        %p257 = pneg %p126
        %p258 = pneg %p123
        %p259 = pneg %p147
        %p260 = pneg %p144
        %p261 = pneg %p168
        %p262 = pneg %p165
        %p263 = pneg %p194
        %p264 = pneg %p191
        %s265 = sand.u32 %s181, 1
        %s266 = scalar_lea.sflag [#allocation3], %s265
        %s267 = sand.u32 %s181, 1
        %s268 = smul.addr %s267, 4
        %s269 = scalar_lea.vmem [#allocation2], %s268
        %p270 = scmp.lt.s32.totalorder %s21, 1
        %s271 = scalar_select %p270, %s21, 1
        %s272 = smul.addr %s271, 4
        %s273 = scalar_lea.vmem %s0, %s272
        %v275 = vld [vmem:[%s273] sm:$0xf]
        %v276 = vpack.c.bf16 %v275, %v275
        %v277 = vld [vmem:[%s1] sm:$0xf]
        %v278 = vld [vmem:[%s1 + $0x4] sm:$0xf]
        %v279 = vld [vmem:[%s2] sm:$0xff]
        %v280 = vld [vmem:[%s2 + $0x8] sm:$0xff]
        %282 = vset.pattern.permute.xlu0 0
        %283 = vperm.xlu0 %282, %v279
        %v284 = vpop.permute.xlu0 %283
        %287 = vset.pattern.permute.xlu0 0
        %288 = vperm.xlu0 %287, %v280
        %v289 = vpop.permute.xlu0 %288
        %v293 = vunpack.c.l.b16 %v277
        %v294 = vunpack.c.l.b16 %v278
        %v295 = vpack.c.b16 %v294, %v293
        %vm296 = vcmask 31744
        %v298 = vsel %vm296, %v295, 0
        %vm300 = vcmask 1041408
        %v302 = vsel %vm300, %v276, 0
        %304 = vmatprep.subr.bf16.mxu0 0
        %305 = vmatpush1.bf16.msra.mxu0 %v302
        %306 = vmatprep.subr.bf16.mxu0 0
        %307 = vmatpush1.bf16.msra.mxu0 0
        %308 = vmatprep.subr.bf16.mxu0 0
        %309 = vmatpush1.bf16.msra.mxu0 0
        %310 = vmatprep.subr.bf16.mxu0 0
        %311 = vmatpush1.bf16.msra.mxu0 0
        %312 = vmatprep.subr.bf16.mxu0 0
        %313 = vmatpush1.bf16.msra.mxu0 0
        %314 = vmatprep.subr.bf16.mxu0 0
        %315 = vmatpush1.bf16.msra.mxu0 0
        %316 = vmatprep.subr.bf16.mxu0 0
        %317 = vmatpush1.bf16.msra.mxu0 0
        %318 = vmatprep.subr.bf16.mxu0 0
        %319 = vmatpush1.bf16.msra.mxu0 0
        %320 = vmatprep.subr.bf16.mxu0 0
        %321 = vmatpush1.bf16.msra.mxu0 0
        %322 = vmatprep.subr.bf16.mxu0 0
        %323 = vmatpush1.bf16.msra.mxu0 0
        %324 = vmatprep.subr.bf16.mxu0 0
        %325 = vmatpush1.bf16.msra.mxu0 0
        %326 = vmatprep.subr.bf16.mxu0 0
        %327 = vmatpush1.bf16.msra.mxu0 0
        %328 = vmatprep.subr.bf16.mxu0 0
        %329 = vmatpush1.bf16.msra.mxu0 0
        %330 = vmatprep.subr.bf16.mxu0 0
        %331 = vmatpush1.bf16.msra.mxu0 0
        %332 = vmatprep.subr.bf16.mxu0 0
        %333 = vmatpush1.bf16.msra.mxu0 0
        %334 = vmatprep.subr.bf16.mxu0 0
        %335 = vmatpush1.bf16.msra.mxu0 0
        %336 = vmatprep.mubr.bf16.mxu0 0
        %337 = vmatmul.mubr.bf16.gmra.mrb[0].mxu0 %v298
        %v338 = vpop.f32.mrb[0].mxu0
        %v339 = vadd.f32 %v284, %v338
        %v340 = vpop.f32.mrb[0].mxu0
        %v341 = vpop.f32.mrb[0].mxu0
        %v342 = vadd.f32 %v289, %v341
        %v343 = vpop.f32.mrb[0].mxu0
        %344 = vdwg.mxu0
        %v345 = vmax.f32 %v339, 0.0
        %v346 = vmax.f32 %v342, 0.0
        %v347 = vld [vmem:[%s3] sm:$0xf]
        %v348 = vld [vmem:[%s3 + $0x4] sm:$0xf]
        %v349 = vpack.c.bf16 %v346, %v345
        %v350 = vld [vmem:[%s4] sm:$0xff]
        %v351 = vld [vmem:[%s4 + $0x8] sm:$0xff]
        %353 = vset.pattern.permute.xlu0 0
        %354 = vperm.xlu0 %353, %v350
        %v355 = vpop.permute.xlu0 %354
        %358 = vset.pattern.permute.xlu0 0
        %359 = vperm.xlu0 %358, %v351
        %v360 = vpop.permute.xlu0 %359
        %v364 = vunpack.c.l.b16 %v347
        %v365 = vunpack.c.l.b16 %v348
        %v366 = vpack.c.b16 %v365, %v364
        %vm367 = vcmask 130048
        %v369 = vsel %vm367, %v366, 0
        %371 = vmatprep.subr.bf16.mxu0 0
        %372 = vmatpush1.bf16.msra.mxu0 %v349
        %373 = vmatprep.subr.bf16.mxu0 0
        %374 = vmatpush1.bf16.msra.mxu0 0
        %375 = vmatprep.subr.bf16.mxu0 0
        %376 = vmatpush1.bf16.msra.mxu0 0
        %377 = vmatprep.subr.bf16.mxu0 0
        %378 = vmatpush1.bf16.msra.mxu0 0
        %379 = vmatprep.subr.bf16.mxu0 0
        %380 = vmatpush1.bf16.msra.mxu0 0
        %381 = vmatprep.subr.bf16.mxu0 0
        %382 = vmatpush1.bf16.msra.mxu0 0
        %383 = vmatprep.subr.bf16.mxu0 0
        %384 = vmatpush1.bf16.msra.mxu0 0
        %385 = vmatprep.subr.bf16.mxu0 0
        %386 = vmatpush1.bf16.msra.mxu0 0
        %387 = vmatprep.subr.bf16.mxu0 0
        %388 = vmatpush1.bf16.msra.mxu0 0
        %389 = vmatprep.subr.bf16.mxu0 0
        %390 = vmatpush1.bf16.msra.mxu0 0
        %391 = vmatprep.subr.bf16.mxu0 0
        %392 = vmatpush1.bf16.msra.mxu0 0
        %393 = vmatprep.subr.bf16.mxu0 0
        %394 = vmatpush1.bf16.msra.mxu0 0
        %395 = vmatprep.subr.bf16.mxu0 0
        %396 = vmatpush1.bf16.msra.mxu0 0
        %397 = vmatprep.subr.bf16.mxu0 0
        %398 = vmatpush1.bf16.msra.mxu0 0
        %399 = vmatprep.subr.bf16.mxu0 0
        %400 = vmatpush1.bf16.msra.mxu0 0
        %401 = vmatprep.subr.bf16.mxu0 0
        %402 = vmatpush1.bf16.msra.mxu0 0
        %403 = vmatprep.mubr.bf16.mxu0 0
        %404 = vmatmul.mubr.bf16.gmra.mrb[0].mxu0 %v369
        %v405 = vpop.f32.mrb[0].mxu0
        %v406 = vadd.f32 %v355, %v405
        %v407 = vpop.f32.mrb[0].mxu0
        %v408 = vpop.f32.mrb[0].mxu0
        %v409 = vadd.f32 %v360, %v408
        %v410 = vpop.f32.mrb[0].mxu0
        %411 = vdwg.mxu0
        %v412 = vmax.f32 %v406, 0.0
        %v413 = vmax.f32 %v409, 0.0
        %v414 = vld [vmem:[%s5] sm:$0x3]
        %v415 = vpack.c.bf16 %v413, %v412
        %v416 = vld [vmem:[%s6] sm:$0xf]
        %418 = vset.pattern.permute.xlu0 0
        %419 = vperm.xlu0 %418, %v416
        %v420 = vpop.permute.xlu0 %419
        %v423 = vsel %vm367, %v414, 0
        %425 = vmatprep.subr.bf16.mxu0 0
        %426 = vmatpush1.bf16.msra.mxu0 %v415
        %427 = vmatprep.subr.bf16.mxu0 0
        %428 = vmatpush1.bf16.msra.mxu0 0
        %429 = vmatprep.subr.bf16.mxu0 0
        %430 = vmatpush1.bf16.msra.mxu0 0
        %431 = vmatprep.subr.bf16.mxu0 0
        %432 = vmatpush1.bf16.msra.mxu0 0
        %433 = vmatprep.subr.bf16.mxu0 0
        %434 = vmatpush1.bf16.msra.mxu0 0
        %435 = vmatprep.subr.bf16.mxu0 0
        %436 = vmatpush1.bf16.msra.mxu0 0
        %437 = vmatprep.subr.bf16.mxu0 0
        %438 = vmatpush1.bf16.msra.mxu0 0
        %439 = vmatprep.subr.bf16.mxu0 0
        %440 = vmatpush1.bf16.msra.mxu0 0
        %441 = vmatprep.subr.bf16.mxu0 0
        %442 = vmatpush1.bf16.msra.mxu0 0
        %443 = vmatprep.subr.bf16.mxu0 0
        %444 = vmatpush1.bf16.msra.mxu0 0
        %445 = vmatprep.subr.bf16.mxu0 0
        %446 = vmatpush1.bf16.msra.mxu0 0
        %447 = vmatprep.subr.bf16.mxu0 0
        %448 = vmatpush1.bf16.msra.mxu0 0
        %449 = vmatprep.subr.bf16.mxu0 0
        %450 = vmatpush1.bf16.msra.mxu0 0
        %451 = vmatprep.subr.bf16.mxu0 0
        %452 = vmatpush1.bf16.msra.mxu0 0
        %453 = vmatprep.subr.bf16.mxu0 0
        %454 = vmatpush1.bf16.msra.mxu0 0
        %455 = vmatprep.subr.bf16.mxu0 0
        %456 = vmatpush1.bf16.msra.mxu0 0
        %457 = vmatprep.mubr.bf16.mxu0 0
        %458 = vmatmul.mubr.bf16.gmra.mrb[0].mxu0 %v423
        %v459 = vpop.f32.mrb[0].mxu0
        %v460 = vadd.f32 %v420, %v459
        %v461 = vpop.f32.mrb[0].mxu0
        %v462 = vpop.f32.mrb[0].mxu0
        %v463 = vpop.f32.mrb[0].mxu0
        %464 = vdwg.mxu0
        %465 = vst [vmem:[%s269] sm:$0xf] %v460
        %s466 = sand.u32 %s181, 1
        %s467 = scalar_lea.sflag [#allocation3], %s466
        %s468 = sand.u32 %s181, 1
        %s469 = smul.addr %s468, 4
        %s470 = scalar_lea.vmem [#allocation2], %s469
        // Predicated region
        $region49: #{tpu_custom_call.1} parent=47 // pred_check
          %p471 = pneg %p191
        $region50: #{tpu_custom_call.1} parent=47 // pred_check_branch
          %473 = sbr.rel (%p471) target = $region52
        $region51: #{tpu_custom_call.1} parent=47 // pred_region
          %s475 = ssub.s32 64, 64
          %476 = vsyncadd %s467, %s475
          %s477 = smul.addr %s21, 64
          %s478 = scalar_lea.hbm %s7, %s477
          %s480 = sshll.u32 %s470, 4
          %s481 = int_to_ptr.vmem [resolvable:$true] %s480
          %483 = dma.vmem_to_hbm [thread:$0]  %s481, 64, %s478, %s467
        $region52: #{tpu_custom_call.1} parent=47 // pred_fallthru
          _
      $region48: #{tpu_custom_call.1} parent=5 // pred_fallthru
        _
      %p484 = scmp.le.s32.totalorder 2, %s16
      // Predicated region
      $region53: #{tpu_custom_call.1} parent=5 // pred_check
        %p485 = pneg %p484
      $region54: #{tpu_custom_call.1} parent=5 // pred_check_branch
        %487 = sbr.rel (%p485) target = $region56
      $region55: #{tpu_custom_call.1} parent=5 // pred_region
        %s488 = ssub.s32 %s16, 2
        // Predicated region
        $region57: #{tpu_custom_call.1} parent=55 // pred_check
          %p489 = pneg %p197
        $region58: #{tpu_custom_call.1} parent=55 // pred_check_branch
          %491 = sbr.rel (%p489) target = $region60
        $region59: #{tpu_custom_call.1} parent=55 // pred_region
          %s492 = sand.u32 %s182, 1
          %s493 = scalar_lea.sflag [#allocation3], %s492
          %s494 = sand.u32 %s182, 1
          %s495 = smul.addr %s494, 4
          %s496 = scalar_lea.vmem [#allocation2], %s495
          %497 = dma.done %s493, 64
        $region60: #{tpu_custom_call.1} parent=55 // pred_fallthru
          _
      $region56: #{tpu_custom_call.1} parent=5 // pred_fallthru
        _
    $region6: #{tpu_custom_call.1} parent=1 // loop_footer
      %s20 = sadd.s32 1, %s16
    $region7: #{tpu_custom_call.1} parent=1 // loop_footer_branch
      %15 = sbr.rel target = $region3
    $region8: #{tpu_custom_call.1} parent=1 // loop_exit
      _
    %498 = vsyncpa [#allocation3], 1
    %s499 = scalar_lea.sflag [#allocation3], 1
    %500 = vsyncpa %s499, 1

</llo_original>
